<compile_context>
chip_gen: v7x
topology: tpu7x:2x2x1
jax: 0.10.0
libtpu: 0.0.40
codegen_flags: <defaults>
</compile_context>

<pallas_src>
import jax
import jax.numpy as jnp
from jax import lax
from jax.experimental import pallas as pl
from jax.experimental.pallas import tpu as pltpu


# --------------------------------------------------------------------------- #
# Kernels
# --------------------------------------------------------------------------- #
def _proj_kernel_fullk(x_ref, w_ref, b_ref, o_ref):
    """Full-D panel: one output tile per grid step, no reduction axis."""
    acc = lax.dot_general(
        x_ref[...], w_ref[...],                       # (tm, D) . (tn, D)^T
        dimension_numbers=(((1,), (1,)), ((), ())),
        preferred_element_type=jnp.float32)
    o_ref[...] = (acc + b_ref[...]).astype(o_ref.dtype)


def _proj_kernel_ksplit(x_ref, w_ref, b_ref, o_ref, acc_ref):
    """K split across the innermost grid axis; bias folded into the acc init."""
    k = pl.program_id(2)

    @pl.when(k == 0)
    def _():
        acc_ref[...] = jnp.broadcast_to(b_ref[...], acc_ref.shape).astype(jnp.float32)

    acc_ref[...] += lax.dot_general(
        x_ref[...], w_ref[...],                       # (tm, tk) . (tn, tk)^T
        dimension_numbers=(((1,), (1,)), ((), ())),
        preferred_element_type=jnp.float32)

    @pl.when(k == pl.num_programs(2) - 1)
    def _():
        o_ref[...] = acc_ref[...].astype(o_ref.dtype)


# --------------------------------------------------------------------------- #
# Wrapper
# --------------------------------------------------------------------------- #
def _round_up(v, m):
    return ((v + m - 1) // m) * m


def _largest_divisor_tile(dim, target, align):
    """Largest multiple of `align` that divides `dim` and is <= target.

    `dim` must already be a multiple of `align`.
    """
    if dim <= target:
        return dim
    t = (target // align) * align
    while t > align and dim % t:
        t -= align
    return t


def output_projection(x, weight, bias, *, compute_dtype=jnp.bfloat16,
                      tm_target=512, tn_target=512, tk_target=1024,
                      full_k_threshold=2048):
    """x: (B, S, D); weight: (V, D) PyTorch layout; bias: (V,). Returns (B, S, V)."""
    B, S, D = x.shape
    V, D2 = weight.shape
    assert D2 == D, "weight must be (vocab_size, model_dimensions)"
    out_dtype = x.dtype

    # Fold (B, S) into a single row axis -> one big (M, D) @ (D, V) matmul.
    M = B * S
    x2d = x.reshape(M, D)

    # ---- M axis: only the cheap activation rows are ever padded ----
    if M <= tm_target:
        Mp = _round_up(M, 8)
        tm = Mp
    else:
        Mp = _round_up(M, tm_target)
        tm = tm_target

    # ---- K (= model_dimensions) axis ----
    if D <= full_k_threshold:
        Dp, tk, split_k = D, D, False          # full-D panel, no K grid axis
    else:
        Dp = _round_up(D, 128)
        tk = _largest_divisor_tile(Dp, tk_target, 128)
        split_k = True

    # ---- V (= vocab) axis: pick tn dividing V when V is 128-aligned ----
    if V <= tn_target:
        Vp, tn = V, V
    else:
        Vp = _round_up(V, 128)
        tn = _largest_divisor_tile(Vp, tn_target, 128)
    # v7x megacore: prefer >=2 tiles along V so the two TensorCores stream
    # disjoint weight columns instead of duplicating the same weight reads.
    if (Mp // tm) * (Vp // tn) < 2 and tn % 256 == 0:
        tn //= 2

    # ---- pad only what is strictly required (zero padding is exact) ----
    if Mp != M or Dp != D:
        x2d = jnp.pad(x2d, ((0, Mp - M), (0, Dp - D)))
    w, b = weight, bias
    if Vp != V or Dp != D:
        w = jnp.pad(w, ((0, Vp - V), (0, Dp - D)))
        b = jnp.pad(b, ((0, Vp - V),))

    # bf16 feed for the MXU (f32 accumulation inside the kernel).  For a real
    # LM head, store/cast the weight to bf16 once outside the per-call path.
    x2d = x2d.astype(compute_dtype)
    w = w.astype(compute_dtype)                 # native (V, D) layout - no transpose
    b2d = b.reshape(1, Vp).astype(jnp.float32)

    grid_i, grid_j = Mp // tm, Vp // tn

    if not split_k:
        out = pl.pallas_call(
            _proj_kernel_fullk,
            out_shape=jax.ShapeDtypeStruct((Mp, Vp), out_dtype),
            grid_spec=pltpu.PrefetchScalarGridSpec(
                num_scalar_prefetch=0,
                grid=(grid_i, grid_j),
                in_specs=[
                    pl.BlockSpec((tm, Dp), lambda i, j: (i, 0)),   # activations
                    pl.BlockSpec((tn, Dp), lambda i, j: (j, 0)),   # weight (V, D)
                    pl.BlockSpec((1, tn), lambda i, j: (0, j)),    # bias
                ],
                out_specs=pl.BlockSpec((tm, tn), lambda i, j: (i, j)),
            ),
            compiler_params=pltpu.CompilerParams(
                dimension_semantics=("parallel", "parallel")),
        )(x2d, w, b2d)
    else:
        grid_k = Dp // tk
        out = pl.pallas_call(
            _proj_kernel_ksplit,
            out_shape=jax.ShapeDtypeStruct((Mp, Vp), out_dtype),
            grid_spec=pltpu.PrefetchScalarGridSpec(
                num_scalar_prefetch=0,
                grid=(grid_i, grid_j, grid_k),
                in_specs=[
                    pl.BlockSpec((tm, tk), lambda i, j, k: (i, k)),  # activations
                    pl.BlockSpec((tn, tk), lambda i, j, k: (j, k)),  # weight (V, D)
                    pl.BlockSpec((1, tn), lambda i, j, k: (0, j)),   # bias
                ],
                out_specs=pl.BlockSpec((tm, tn), lambda i, j, k: (i, j)),
                scratch_shapes=[pltpu.VMEM((tm, tn), jnp.float32)],
            ),
            compiler_params=pltpu.CompilerParams(
                dimension_semantics=("parallel", "parallel", "arbitrary")),
        )(x2d, w, b2d)

    if Mp != M or Vp != V:
        out = out[:M, :V]
    return out.reshape(B, S, V)


# TODO(synk): the downstream cross-entropy could be fused (online logsumexp +
# label gather) so the (M, V) logits never hit HBM, but that changes the
# module's interface, so only the nn.Linear forward is implemented here.


# --------------------------------------------------------------------------- #
# Self-test
# --------------------------------------------------------------------------- #
if __name__ == "__main__":
    # Small shapes consistent with the module: batch=2, seq=8,
    # model_dimensions=128, vocab_size=256.
    B, S, D, V = 2, 8, 128, 256
    key = jax.random.PRNGKey(0)
    kx, kw, kb = jax.random.split(key, 3)

    x = jax.random.normal(kx, (B, S, D), dtype=jnp.float32)
    weight = 0.05 * jax.random.normal(kw, (V, D), dtype=jnp.float32)  # (out, in)
    bias = 0.01 * jax.random.normal(kb, (V,), dtype=jnp.float32)

    out = jax.block_until_ready(output_projection(x, weight, bias))
    assert out.shape == (B, S, V)

    # Reference with the same bf16-input / f32-accumulate numerics as the kernel.
    xb = x.astype(jnp.bfloat16).astype(jnp.float32)
    wb = weight.astype(jnp.bfloat16).astype(jnp.float32)
    ref_bf16 = jnp.einsum("bsd,vd->bsv", xb, wb) + bias
    assert jnp.allclose(out, ref_bf16, rtol=1e-3, atol=1e-3), "mismatch vs bf16 ref"

    # Loose sanity check against the exact f32 nn.Linear math (bf16 feed is a
    # deliberate numerics trade per the perf review).
    ref_f32 = jnp.einsum("bsd,vd->bsv", x, weight) + bias
    assert jnp.allclose(out, ref_f32, rtol=5e-2, atol=5e-2), "mismatch vs f32 ref"

    print("KERNEL_OK")
</pallas_src>

<mosaic_0001>
module attributes {stable_mosaic.version = 11 : i64} {
  func.func @_proj_kernel_fullk(%arg0: i32, %arg1: i32, %arg2: memref<16x128xbf16, #tpu.memory_space<vmem>>, %arg3: memref<128x128xbf16, #tpu.memory_space<vmem>>, %arg4: memref<1x128xf32, #tpu.memory_space<vmem>>, %arg5: memref<16x128xf32, #tpu.memory_space<vmem>>) attributes {dimension_semantics = [#tpu.dimension_semantics<parallel>, #tpu.dimension_semantics<parallel>], iteration_bounds = array<i64: 1, 2>, scalar_prefetch = 0 : i64, scratch_operands = 0 : i64, tpu.core_type = #tpu.core_type<tc>, window_params = [{transform_indices = @transform_0, window_bounds = array<i64: 16, 128>}, {transform_indices = @transform_1, window_bounds = array<i64: 128, 128>}, {transform_indices = @transform_2, window_bounds = array<i64: 1, 128>}, {transform_indices = @transform_3, window_bounds = array<i64: 16, 128>}]} {
    %c0 = arith.constant 0 : index
    %c0_0 = arith.constant 0 : index
    %0 = vector.load %arg2[%c0, %c0_0] : memref<16x128xbf16, #tpu.memory_space<vmem>>, vector<16x128xbf16>
    %c0_1 = arith.constant 0 : index
    %c0_2 = arith.constant 0 : index
    %1 = vector.load %arg3[%c0_1, %c0_2] : memref<128x128xbf16, #tpu.memory_space<vmem>>, vector<128x128xbf16>
    %cst = arith.constant dense<0.000000e+00> : vector<16x128xf32>
    %2 = tpu.matmul %0, %1, %cst {dimension_numbers = #tpu.dot_dimension_numbers<[1], [1], [0], [0], [0, 0, 1, 0], [], []>} : vector<16x128xbf16>, vector<128x128xbf16>, vector<16x128xf32> -> vector<16x128xf32>
    %c0_3 = arith.constant 0 : index
    %c0_4 = arith.constant 0 : index
    %3 = vector.load %arg4[%c0_3, %c0_4] : memref<1x128xf32, #tpu.memory_space<vmem>>, vector<1x128xf32>
    %4 = vector.broadcast %3 : vector<1x128xf32> to vector<16x128xf32>
    %5 = arith.addf %2, %4 : vector<16x128xf32>
    %c0_5 = arith.constant 0 : index
    %c0_6 = arith.constant 0 : index
    %6 = vector.load %arg5[%c0_5, %c0_6] : memref<16x128xf32, #tpu.memory_space<vmem>>, vector<16x128xf32>
    tpu.vector_store %arg5[%c0_5, %c0_6], %5 {strides = array<i32>} : memref<16x128xf32, #tpu.memory_space<vmem>>, vector<16x128xf32>,
    return
  }
  func.func @transform_0(%arg0: i32, %arg1: i32) -> (i32, i32) {
    %c0_i32 = arith.constant 0 : i32
    %c0_i32_0 = arith.constant 0 : i32
    return %arg0, %c0_i32 : i32, i32
  }
  func.func @transform_1(%arg0: i32, %arg1: i32) -> (i32, i32) {
    %c0_i32 = arith.constant 0 : i32
    %c0_i32_0 = arith.constant 0 : i32
    return %arg1, %c0_i32 : i32, i32
  }
  func.func @transform_2(%arg0: i32, %arg1: i32) -> (i32, i32) {
    %c0_i32 = arith.constant 0 : i32
    %c0_i32_0 = arith.constant 0 : i32
    return %c0_i32, %arg1 : i32, i32
  }
  func.func @transform_3(%arg0: i32, %arg1: i32) -> (i32, i32) {
    %c0_i32 = arith.constant 0 : i32
    return %arg0, %arg1 : i32, i32
  }
}

</mosaic_0001>

<llo_original>
// kernel: tpu_custom_call.1
$region0: #{tpu_custom_call.1}
  #allocation0 [shape = 'u32[]', space=smem, size = 0x4, offset = 0x4, fixed_abs, tag = 'smem constant byte address 0x4 - core index']
  #allocation1 [shape = 'u32[144,128]{1,0:T(1,128)}', space=vmem, size = 0x12000, scoped, tag = 'internal scratch']
  %s0 = inlined_call_operand.hbm [shape: bf16[16,128], index: 0, kind: input, shape index: {}]
  %s1 = inlined_call_operand.hbm [shape: bf16[256,128], index: 1, kind: input, shape index: {}]
  %s2 = inlined_call_operand.vmem [shape: f32[1,256], index: 2, kind: input, shape index: {}]
  %s3 = inlined_call_operand.hbm [shape: f32[16,256], index: 3, kind: output, shape index: {}]
  %s4 = sld [smem:[#allocation0]]
  $region53: #{tpu_custom_call.1} parent=0
    _
  %s6 = ssub.s32 1, %s4
  %s7 = scalar_select 0, %s6, %s4
  $region1: #{tpu_custom_call.1} parent=0
    #allocation2 [shape = 'u8[4096]{0}', space=vmem, size = 0x1000, scoped, tag = 'input window, operand 0, single buffered']
    #allocation3 [shape = 's32[2]{0}', space=sflag, size = 0x8, scoped, tag = 'scoped memory for tpu_custom_call.1']
    #allocation4 [shape = 's32[2]{0}', space=sflag, size = 0x8, scoped, tag = 'scoped memory for tpu_custom_call.1']
    #allocation5 [shape = 'u8[65536]{0}', space=vmem, size = 0x10000, scoped, tag = 'input window, operand 1']
    #allocation6 [shape = 's32[2]{0}', space=sflag, size = 0x8, scoped, tag = 'scoped memory for tpu_custom_call.1']
    #allocation7 [shape = 'u8[16384]{0}', space=vmem, size = 0x4000, scoped, tag = 'output window, operand 0']
    %8 = vsyncpa [#allocation3], 0
    %9 = vsyncpa [#allocation6], 0
    %s10 = scalar_lea.sflag [#allocation6], 1
    %11 = vsyncpa %s10, 0
    %12 = vsyncpa [#allocation4], 0
    %s13 = scalar_lea.sflag [#allocation4], 1
    %14 = vsyncpa %s13, 0
    loop: start=0, step=1, limit=4
    $region2: #{tpu_custom_call.1} parent=1 // loop_pre_header
      _
    $region3: #{tpu_custom_call.1} parent=1 // loop_header
      %s16 = sphi 0, %s20
      %p17 = scmp.ge.s32.totalorder %s16, 4
      %s23 = sphi 0, %s35
      %s24 = sphi 0, %s31
      %s25 = sphi 0, %s23
      %s26 = sphi 0, %s24
      %s27 = sphi 0, %s25
      %s28 = sphi 0, %s26
      %s38 = sphi 0, %s40
      %s41 = sphi 0, %s38
      %s42 = sphi 0, %s41
      %s58 = sphi 0, %s42
      %s64 = sphi 0, %s66
      %s67 = sphi 0, %s64
      %s68 = sphi 0, %s67
      %s84 = sphi 0, %s68
      %s90 = sphi 0, %s92
      %s93 = sphi 0, %s90
      %s94 = sphi 0, %s93
      %s110 = sphi 0, %s94
      %s118 = sphi 0, %s120
      %s121 = sphi 0, %s118
      %s122 = sphi 0, %s121
      %s138 = sphi 0, %s122
    $region4: #{tpu_custom_call.1} parent=1 // loop_header_branch
      %19 = sbr.rel (%p17) target = $region8
    $region5: #{tpu_custom_call.1} parent=1 // loop_body
      %s21 = ssub.s32 %s16, 1
      %s22 = ssub.s32 %s16, 2
      %s29 = sadd.s32 1, %s24
      %p30 = scmp.ge.s32.totalorder %s29, 2
      %s31 = scalar_select %p30, 0, %s29
      %s32 = sadd.s32 1, %s23
      %s33 = scalar_select %p30, %s32, %s23
      %p34 = scmp.ge.s32.totalorder %s33, 1
      %s35 = scalar_select %p34, 0, %s33
      %s36 = ssub.s32 %s23, %s35
      %p37 = scmp.eq.s32.totalorder %s36, 0
      %s39 = sadd.s32 %s38, 1
      %s40 = scalar_select %p37, %s38, %s39
      %p43 = pneg %p37
      %p44 = scmp.eq.s32.totalorder %s16, 1
      %p45 = por %p43, %p44
      %p46 = scmp.ne.s32.totalorder %s38, %s41
      %p47 = scmp.eq.s32.totalorder %s16, 0
      %p48 = por %p46, %p47
      %p49 = scmp.ne.s32.totalorder %s38, %s41
      %p50 = scmp.eq.s32.totalorder %s21, 1
      %p51 = por %p49, %p50
      %p52 = scmp.ne.s32.totalorder %s41, %s42
      %p53 = scmp.eq.s32.totalorder %s21, 0
      %p54 = por %p52, %p53
      %p55 = scmp.ne.s32.totalorder %s41, %s42
      %p56 = scmp.eq.s32.totalorder %s22, 1
      %p57 = por %p55, %p56
      %p59 = scmp.ne.s32.totalorder %s42, %s58
      %p60 = scmp.eq.s32.totalorder %s22, 0
      %p61 = por %p59, %p60
      %s62 = ssub.s32 %s24, %s31
      %p63 = scmp.eq.s32.totalorder %s62, 0
      %s65 = sadd.s32 %s64, 1
      %s66 = scalar_select %p63, %s64, %s65
      %p69 = pneg %p63
      %p70 = scmp.eq.s32.totalorder %s16, 1
      %p71 = por %p69, %p70
      %p72 = scmp.ne.s32.totalorder %s64, %s67
      %p73 = scmp.eq.s32.totalorder %s16, 0
      %p74 = por %p72, %p73
      %p75 = scmp.ne.s32.totalorder %s64, %s67
      %p76 = scmp.eq.s32.totalorder %s21, 1
      %p77 = por %p75, %p76
      %p78 = scmp.ne.s32.totalorder %s67, %s68
      %p79 = scmp.eq.s32.totalorder %s21, 0
      %p80 = por %p78, %p79
      %p81 = scmp.ne.s32.totalorder %s67, %s68
      %p82 = scmp.eq.s32.totalorder %s22, 1
      %p83 = por %p81, %p82
      %p85 = scmp.ne.s32.totalorder %s68, %s84
      %p86 = scmp.eq.s32.totalorder %s22, 0
      %p87 = por %p85, %p86
      %s88 = ssub.s32 %s24, %s31
      %p89 = scmp.eq.s32.totalorder %s88, 0
      %s91 = sadd.s32 %s90, 1
      %s92 = scalar_select %p89, %s90, %s91
      %p95 = pneg %p89
      %p96 = scmp.eq.s32.totalorder %s16, 1
      %p97 = por %p95, %p96
      %p98 = scmp.ne.s32.totalorder %s90, %s93
      %p99 = scmp.eq.s32.totalorder %s16, 0
      %p100 = por %p98, %p99
      %p101 = scmp.ne.s32.totalorder %s90, %s93
      %p102 = scmp.eq.s32.totalorder %s21, 1
      %p103 = por %p101, %p102
      %p104 = scmp.ne.s32.totalorder %s93, %s94
      %p105 = scmp.eq.s32.totalorder %s21, 0
      %p106 = por %p104, %p105
      %p107 = scmp.ne.s32.totalorder %s93, %s94
      %p108 = scmp.eq.s32.totalorder %s22, 1
      %p109 = por %p107, %p108
      %p111 = scmp.ne.s32.totalorder %s94, %s110
      %p112 = scmp.eq.s32.totalorder %s22, 0
      %p113 = por %p111, %p112
      %s114 = ssub.s32 %s23, %s35
      %s115 = ssub.s32 %s24, %s31
      %s116 = sor.u32 %s114, %s115
      %p117 = scmp.eq.s32.totalorder %s116, 0
      %s119 = sadd.s32 %s118, 1
      %s120 = scalar_select %p117, %s118, %s119
      %p123 = pneg %p117
      %p124 = scmp.eq.s32.totalorder %s16, 1
      %p125 = por %p123, %p124
      %p126 = scmp.ne.s32.totalorder %s118, %s121
      %p127 = scmp.eq.s32.totalorder %s16, 0
      %p128 = por %p126, %p127
      %p129 = scmp.ne.s32.totalorder %s118, %s121
      %p130 = scmp.eq.s32.totalorder %s21, 1
      %p131 = por %p129, %p130
      %p132 = scmp.ne.s32.totalorder %s121, %s122
      %p133 = scmp.eq.s32.totalorder %s21, 0
      %p134 = por %p132, %p133
      %p135 = scmp.ne.s32.totalorder %s121, %s122
      %p136 = scmp.eq.s32.totalorder %s22, 1
      %p137 = por %p135, %p136
      %p139 = scmp.ne.s32.totalorder %s122, %s138
      %p140 = scmp.eq.s32.totalorder %s22, 0
      %p141 = por %p139, %p140
      %p142 = scmp.le.s32.totalorder 1, %s16
      %p143 = scmp.lt.s32.totalorder %s16, 3
      %p144 = pnand %p142, %p143
      %p145 = pneg %p144
      // Predicated region
      $region9: #{tpu_custom_call.1} parent=5 // pred_check
        _
      $region10: #{tpu_custom_call.1} parent=5 // pred_check_branch
        %147 = sbr.rel (%p144) target = $region12
      $region11: #{tpu_custom_call.1} parent=5 // pred_region
        %s148 = ssub.s32 %s16, 1
        // Predicated region
        $region13: #{tpu_custom_call.1} parent=11 // pred_check
          %p149 = pneg %p54
        $region14: #{tpu_custom_call.1} parent=11 // pred_check_branch
          %151 = sbr.rel (%p149) target = $region16
        $region15: #{tpu_custom_call.1} parent=11 // pred_region
          %s152 = smul.u32 2, %s25
          %s154 = ssub.s32 128, 128
          %155 = vsyncadd [#allocation3], %s154
          %s156 = smul.addr %s152, 64
          %s157 = scalar_lea.hbm %s0, %s156
          %s158 = sshll.u32 [#allocation2], 4
          %s159 = int_to_ptr.vmem [resolvable:$true] %s158
          %164 = dma.hbm_to_vmem [thread:$0]  %s157, 128, %s159, [#allocation3], 64, 64, 4
        $region16: #{tpu_custom_call.1} parent=11 // pred_fallthru
          _
      $region12: #{tpu_custom_call.1} parent=5 // pred_fallthru
        _
      %p165 = scmp.lt.s32.totalorder %s16, 2
      // Predicated region
      $region17: #{tpu_custom_call.1} parent=5 // pred_check
        %p166 = pneg %p165
      $region18: #{tpu_custom_call.1} parent=5 // pred_check_branch
        %168 = sbr.rel (%p166) target = $region20
      $region19: #{tpu_custom_call.1} parent=5 // pred_region
        // Predicated region
        $region21: #{tpu_custom_call.1} parent=19 // pred_check
          %p169 = pneg %p74
        $region22: #{tpu_custom_call.1} parent=19 // pred_check_branch
          %171 = sbr.rel (%p169) target = $region24
        $region23: #{tpu_custom_call.1} parent=19 // pred_region
          %s172 = sand.u32 %s64, 1
          %s173 = scalar_lea.sflag [#allocation6], %s172
          %s174 = sand.u32 %s64, 1
          %s175 = smul.addr %s174, 64
          %s176 = scalar_lea.vmem [#allocation5], %s175
          %s177 = smul.u32 16, %s24
          %s179 = ssub.s32 1024, 1024
          %180 = vsyncadd %s173, %s179
          %s181 = smul.addr %s177, 64
          %s182 = scalar_lea.hbm %s1, %s181
          %s183 = sshll.u32 %s176, 4
          %s184 = int_to_ptr.vmem [resolvable:$true] %s183
          %189 = dma.hbm_to_vmem [thread:$0]  %s182, 1024, %s184, %s173, 64, 64, 4
        $region24: #{tpu_custom_call.1} parent=19 // pred_fallthru
          _
        // Predicated region
        $region25: #{tpu_custom_call.1} parent=19 // pred_check
          %p190 = pneg %p100
        $region26: #{tpu_custom_call.1} parent=19 // pred_check_branch
          %192 = sbr.rel (%p190) target = $region28
        $region27: #{tpu_custom_call.1} parent=19 // pred_region
          %p193 = scmp.lt.s32.totalorder %s24, 1
          %s194 = scalar_select %p193, %s24, 1
          %s195 = scalar_lea.vmem %s2, %s194
        $region28: #{tpu_custom_call.1} parent=19 // pred_fallthru
          _
      $region20: #{tpu_custom_call.1} parent=5 // pred_fallthru
        _
      %p196 = scmp.le.s32.totalorder 1, %s16
      %p197 = scmp.lt.s32.totalorder %s16, 3
      %p198 = pnand %p196, %p197
      %p199 = pneg %p198
      // Predicated region
      $region29: #{tpu_custom_call.1} parent=5 // pred_check
        _
      $region30: #{tpu_custom_call.1} parent=5 // pred_check_branch
        %201 = sbr.rel (%p198) target = $region32
      $region31: #{tpu_custom_call.1} parent=5 // pred_region
        %s202 = ssub.s32 %s16, 1
        // Predicated region
        $region33: #{tpu_custom_call.1} parent=31 // pred_check
          %p203 = pneg %p54
        $region34: #{tpu_custom_call.1} parent=31 // pred_check_branch
          %205 = sbr.rel (%p203) target = $region36
        $region35: #{tpu_custom_call.1} parent=31 // pred_region
          %206 = dma.done [#allocation3], 128
        $region36: #{tpu_custom_call.1} parent=31 // pred_fallthru
          _
        %s207 = sand.u32 %s67, 1
        %s208 = scalar_lea.sflag [#allocation6], %s207
        %s209 = sand.u32 %s67, 1
        %s210 = smul.addr %s209, 64
        %s211 = scalar_lea.vmem [#allocation5], %s210
        // Predicated region
        $region37: #{tpu_custom_call.1} parent=31 // pred_check
          %p212 = pneg %p80
        $region38: #{tpu_custom_call.1} parent=31 // pred_check_branch
          %214 = sbr.rel (%p212) target = $region40
        $region39: #{tpu_custom_call.1} parent=31 // pred_region
          %215 = dma.done %s208, 1024
        $region40: #{tpu_custom_call.1} parent=31 // pred_fallthru
          _
        %p216 = pneg %p54
        %p217 = pneg %p51
        %s218 = sand.u32 %s67, 1
        %s219 = scalar_lea.sflag [#allocation6], %s218
        %s220 = sand.u32 %s67, 1
        %s221 = smul.addr %s220, 64
        %s222 = scalar_lea.vmem [#allocation5], %s221
        %p223 = pneg %p80
        %p224 = pneg %p77
        %p225 = scmp.lt.s32.totalorder %s26, 1
        %s226 = scalar_select %p225, %s26, 1
        %s227 = scalar_lea.vmem %s2, %s226
        %p228 = pneg %p106
        %p229 = pneg %p103
        %p230 = pneg %p134
        %p231 = pneg %p131
        %s232 = sand.u32 %s121, 1
        %s233 = scalar_lea.sflag [#allocation4], %s232
        %s234 = sand.u32 %s121, 1
        %s235 = smul.addr %s234, 16
        %s236 = scalar_lea.vmem [#allocation7], %s235
        %s237 = smul.u32 2, %s25
        %s238 = smul.u32 16, %s26
        %p239 = scmp.lt.s32.totalorder %s26, 1
        %s240 = scalar_select %p239, %s26, 1
        %s241 = scalar_lea.vmem %s2, %s240
        %s242 = smul.u32 2, %s25
        %v244 = vld [vmem:[#allocation2] sm:$0xf]
        %v245 = vld [vmem:[#allocation2 + $0x4] sm:$0xf]
        %v246 = vld [vmem:[%s211] sm:$0xf]
        %v247 = vld [vmem:[%s211 + $0x4] sm:$0xf]
        %v248 = vld [vmem:[%s211 + $0x8] sm:$0xf]
        %v249 = vld [vmem:[%s211 + $0xc] sm:$0xf]
        %v250 = vld [vmem:[%s211 + $0x10] sm:$0xf]
        %v251 = vld [vmem:[%s211 + $0x14] sm:$0xf]
        %v252 = vld [vmem:[%s211 + $0x18] sm:$0xf]
        %v253 = vld [vmem:[%s211 + $0x1c] sm:$0xf]
        %v254 = vld [vmem:[%s211 + $0x20] sm:$0xf]
        %v255 = vld [vmem:[%s211 + $0x24] sm:$0xf]
        %v256 = vld [vmem:[%s211 + $0x28] sm:$0xf]
        %v257 = vld [vmem:[%s211 + $0x2c] sm:$0xf]
        %v258 = vld [vmem:[%s211 + $0x30] sm:$0xf]
        %v259 = vld [vmem:[%s211 + $0x34] sm:$0xf]
        %v260 = vld [vmem:[%s211 + $0x38] sm:$0xf]
        %v261 = vld [vmem:[%s211 + $0x3c] sm:$0xf]
        %v262 = vld [vmem:[%s241] sm:$0x1]
        %v264 = vlaneseq
        %v265 = vshrl.u32 %v264, 7
        %v266 = vsub.s32 0, %v265
        %v267 = vrot.slane %v262, %v266
        %v271 = vunpack.c.l.b16 %v244
        %v272 = vunpack.c.l.b16 %v245
        %v273 = vpack.c.b16 %v272, %v271
        %v291 = vunpack.c.l.b16 %v246
        %v292 = vunpack.c.l.b16 %v247
        %v293 = vunpack.c.l.b16 %v248
        %v294 = vunpack.c.l.b16 %v249
        %v295 = vunpack.c.l.b16 %v250
        %v296 = vunpack.c.l.b16 %v251
        %v297 = vunpack.c.l.b16 %v252
        %v298 = vunpack.c.l.b16 %v253
        %v299 = vunpack.c.l.b16 %v254
        %v300 = vunpack.c.l.b16 %v255
        %v301 = vunpack.c.l.b16 %v256
        %v302 = vunpack.c.l.b16 %v257
        %v303 = vunpack.c.l.b16 %v258
        %v304 = vunpack.c.l.b16 %v259
        %v305 = vunpack.c.l.b16 %v260
        %v306 = vunpack.c.l.b16 %v261
        %v307 = vpack.c.b16 %v292, %v291
        %v308 = vpack.c.b16 %v294, %v293
        %v309 = vpack.c.b16 %v296, %v295
        %v310 = vpack.c.b16 %v298, %v297
        %v311 = vpack.c.b16 %v300, %v299
        %v312 = vpack.c.b16 %v302, %v301
        %v313 = vpack.c.b16 %v304, %v303
        %v314 = vpack.c.b16 %v306, %v305
        %323 = vmatprep.subr.bf16.mxu0 0
        %324 = vmatpush1.bf16.xpose.msra.mxu0 %v307
        %325 = vmatprep.subr.bf16.mxu0 0
        %326 = vmatpush1.bf16.xpose.msra.mxu0 %v308
        %327 = vmatprep.subr.bf16.mxu0 0
        %328 = vmatpush1.bf16.xpose.msra.mxu0 %v309
        %329 = vmatprep.subr.bf16.mxu0 0
        %330 = vmatpush1.bf16.xpose.msra.mxu0 %v310
        %331 = vmatprep.subr.bf16.mxu0 0
        %332 = vmatpush1.bf16.xpose.msra.mxu0 %v311
        %333 = vmatprep.subr.bf16.mxu0 0
        %334 = vmatpush1.bf16.xpose.msra.mxu0 %v312
        %335 = vmatprep.subr.bf16.mxu0 0
        %336 = vmatpush1.bf16.xpose.msra.mxu0 %v313
        %337 = vmatprep.subr.bf16.mxu0 0
        %338 = vmatpush1.bf16.xpose.msra.mxu0 %v314
        %339 = vmatprep.subr.bf16.mxu0 0
        %340 = vmatpush1.bf16.xpose.msra.mxu0 0
        %341 = vmatprep.subr.bf16.mxu0 0
        %342 = vmatpush1.bf16.xpose.msra.mxu0 0
        %343 = vmatprep.subr.bf16.mxu0 0
        %344 = vmatpush1.bf16.xpose.msra.mxu0 0
        %345 = vmatprep.subr.bf16.mxu0 0
        %346 = vmatpush1.bf16.xpose.msra.mxu0 0
        %347 = vmatprep.subr.bf16.mxu0 0
        %348 = vmatpush1.bf16.xpose.msra.mxu0 0
        %349 = vmatprep.subr.bf16.mxu0 0
        %350 = vmatpush1.bf16.xpose.msra.mxu0 0
        %351 = vmatprep.subr.bf16.mxu0 0
        %352 = vmatpush1.bf16.xpose.msra.mxu0 0
        %353 = vmatprep.subr.bf16.mxu0 0
        %354 = vmatpush1.bf16.xpose.msra.mxu0 0
        %355 = vmatprep.mubr.bf16.mxu0 0
        %356 = vmatmul.mubr.bf16.gmra.mrb[0].mxu0 %v273
        %v357 = vpop.f32.mrb[0].mxu0
        %v358 = vadd.f32 %v267, %v357
        %v359 = vpop.f32.mrb[0].mxu0
        %v360 = vpop.f32.mrb[0].mxu0
        %v361 = vadd.f32 %v267, %v360
        %v362 = vpop.f32.mrb[0].mxu0
        %363 = vdwg.mxu0
        %364 = vst [vmem:[%s236] sm:$0xff] %v358
        %365 = vst [vmem:[%s236 + $0x8] sm:$0xff] %v361
        %s366 = sand.u32 %s121, 1
        %s367 = scalar_lea.sflag [#allocation4], %s366
        %s368 = sand.u32 %s121, 1
        %s369 = smul.addr %s368, 16
        %s370 = scalar_lea.vmem [#allocation7], %s369
        // Predicated region
        $region41: #{tpu_custom_call.1} parent=31 // pred_check
          %p371 = pneg %p131
        $region42: #{tpu_custom_call.1} parent=31 // pred_check_branch
          %373 = sbr.rel (%p371) target = $region44
        $region43: #{tpu_custom_call.1} parent=31 // pred_region
          %s374 = smul.u32 2, %s25
          %s376 = ssub.s32 256, 256
          %377 = vsyncadd %s367, %s376
          %s378 = smul.addr %s374, 2
          %s379 = sadd.s32 %s26, %s378
          %s380 = smul.addr %s379, 128
          %s381 = scalar_lea.hbm %s3, %s380
          %s382 = sshll.u32 %s370, 4
          %s383 = int_to_ptr.vmem [resolvable:$true] %s382
          %388 = dma.vmem_to_hbm [thread:$0]  %s383, 256, %s381, %s367, 128, 256, 8
        $region44: #{tpu_custom_call.1} parent=31 // pred_fallthru
          _
      $region32: #{tpu_custom_call.1} parent=5 // pred_fallthru
        _
      %p389 = scmp.le.s32.totalorder 2, %s16
      // Predicated region
      $region45: #{tpu_custom_call.1} parent=5 // pred_check
        %p390 = pneg %p389
      $region46: #{tpu_custom_call.1} parent=5 // pred_check_branch
        %392 = sbr.rel (%p390) target = $region48
      $region47: #{tpu_custom_call.1} parent=5 // pred_region
        %s393 = ssub.s32 %s16, 2
        // Predicated region
        $region49: #{tpu_custom_call.1} parent=47 // pred_check
          %p394 = pneg %p137
        $region50: #{tpu_custom_call.1} parent=47 // pred_check_branch
          %396 = sbr.rel (%p394) target = $region52
        $region51: #{tpu_custom_call.1} parent=47 // pred_region
          %s397 = sand.u32 %s122, 1
          %s398 = scalar_lea.sflag [#allocation4], %s397
          %s399 = sand.u32 %s122, 1
          %s400 = smul.addr %s399, 16
          %s401 = scalar_lea.vmem [#allocation7], %s400
          %402 = dma.done %s398, 256
        $region52: #{tpu_custom_call.1} parent=47 // pred_fallthru
          _
      $region48: #{tpu_custom_call.1} parent=5 // pred_fallthru
        _
    $region6: #{tpu_custom_call.1} parent=1 // loop_footer
      %s20 = sadd.s32 1, %s16
    $region7: #{tpu_custom_call.1} parent=1 // loop_footer_branch
      %15 = sbr.rel target = $region3
    $region8: #{tpu_custom_call.1} parent=1 // loop_exit
      _
    %403 = vsyncpa [#allocation3], 1
    %s404 = scalar_lea.sflag [#allocation3], 1
    %405 = vsyncpa %s404, 1
    %406 = vsyncpa [#allocation6], 1
    %s407 = scalar_lea.sflag [#allocation6], 1
    %408 = vsyncpa %s407, 1
    %409 = vsyncpa [#allocation4], 1
    %s410 = scalar_lea.sflag [#allocation4], 1
    %411 = vsyncpa %s410, 1

</llo_original>
